<compile_context>
chip_gen: v7x
topology: tpu7x:2x2x1
jax: 0.10.0
libtpu: 0.0.40
codegen_flags: <defaults>
</compile_context>

<pallas_src>
import jax
import jax.numpy as jnp
from jax.experimental import pallas as pl
from jax.experimental.pallas import tpu as pltpu

_BLOCK_ROWS = 512  # (512, 128) f32 block = 256 KiB per class slab per step


def _rpn_cls_loss_kernel(x_ref, y_ref, out_ref, acc_ref):
    # x_ref:  (2, BR, 128) f32 VMEM  (x_ref[0] = class-0 logits, x_ref[1] = class-1)
    # y_ref:  (BR, 128)    f32 VMEM  labels in {-1, 0, 1}; -1 = ignore / padding
    # out_ref:(1, 1)       f32 SMEM  final scalar loss
    # acc_ref:(2,)         f32 SMEM  [loss_sum, valid_count] accumulators
    @pl.when(pl.program_id(0) == 0)
    def _init():
        acc_ref[0] = 0.0
        acc_ref[1] = 0.0

    x0 = x_ref[0]
    x1 = x_ref[1]
    y = y_ref[...]

    valid = y != -1.0
    # 2-class cross-entropy closed form: -log_softmax[true] = softplus(x_other - x_true)
    d = jnp.where(y == 1.0, x0 - x1, x1 - x0)
    per = jnp.maximum(d, 0.0) + jnp.log(1.0 + jnp.exp(-jnp.abs(d)))
    per = jnp.where(valid, per, 0.0)  # select (not mul) -> no inf*0 NaN on ignored anchors

    acc_ref[0] += jnp.sum(per)
    acc_ref[1] += jnp.sum(valid.astype(jnp.float32))

    @pl.when(pl.program_id(0) == pl.num_programs(0) - 1)
    def _finalize():
        loss_sum = acc_ref[0]
        count = acc_ref[1]
        mean = jnp.where(count > 0.0, loss_sum / jnp.maximum(count, 1.0), 0.0)
        out_ref[0, 0] = jnp.clip(mean, 0.0, 10.0)


def rpn_cls_loss(cls_input, target):
    """cls_input: (1, N, 2) f32 logits; target: (1, 1, N) labels in {-1, 0, 1}."""
    cls_pred = cls_input[0]  # (N, 2)
    y_true = target[0, 0]    # (N,)
    n = cls_pred.shape[0]

    rows = -(-n // 128)                             # ceil(N / 128)
    br = min(_BLOCK_ROWS, ((rows + 7) // 8) * 8)    # block rows, multiple of 8
    r_pad = -(-rows // br) * br                     # padded row count
    n_pad = r_pad * 128

    # Single (N,2)->(2,N) transpose instead of two stride-2 column gathers.
    x = jnp.transpose(cls_pred.astype(jnp.float32))            # (2, N)
    x = jnp.pad(x, ((0, 0), (0, n_pad - n)))                   # pad logits with 0 (ignored)
    x = x.reshape(2, r_pad, 128)                                # lane+sublane dense

    y = jnp.pad(y_true.astype(jnp.float32), (0, n_pad - n),
                constant_values=-1.0)                           # pad labels with ignore
    y = y.reshape(r_pad, 128)

    out = pl.pallas_call(
        _rpn_cls_loss_kernel,
        out_shape=jax.ShapeDtypeStruct((1, 1), jnp.float32),
        grid_spec=pltpu.PrefetchScalarGridSpec(
            num_scalar_prefetch=0,
            grid=(r_pad // br,),
            in_specs=[
                pl.BlockSpec((2, br, 128), lambda i: (0, i, 0)),
                pl.BlockSpec((br, 128), lambda i: (i, 0)),
            ],
            out_specs=pl.BlockSpec((1, 1), lambda i: (0, 0),
                                   memory_space=pltpu.MemorySpace.SMEM),
            scratch_shapes=[pltpu.SMEM((2,), jnp.float32)],
        ),
        compiler_params=pltpu.CompilerParams(
            dimension_semantics=("arbitrary",)),
    )(x, y)
    return out[0, 0]


def _reference(cls_input, target):
    # pure-JAX reference of the same (non-OHEM) branch, for verification
    cls_pred = cls_input[0].astype(jnp.float32)
    y = target[0, 0].astype(jnp.float32)
    logp = jax.nn.log_softmax(cls_pred, axis=-1)
    picked = jnp.where(y == 1.0, logp[:, 1], logp[:, 0])
    valid = (y != -1.0).astype(jnp.float32)
    count = jnp.sum(valid)
    mean = jnp.where(count > 0.0,
                     jnp.sum(jnp.where(valid > 0.0, -picked, 0.0)) / jnp.maximum(count, 1.0),
                     0.0)
    return jnp.clip(mean, 0.0, 10.0)


if __name__ == "__main__":
    key = jax.random.PRNGKey(0)
    k1, k2 = jax.random.split(key)

    N = 300  # number of anchors (small, deliberately not lane-aligned to exercise padding)
    cls_input = jax.random.normal(k1, (1, N, 2), dtype=jnp.float32)
    # labels in {-1, 0, 1}: -1 = ignore, 0 = negative, 1 = positive
    labels = jax.random.randint(k2, (1, 1, N), minval=-1, maxval=2).astype(jnp.float32)

    loss = rpn_cls_loss(cls_input, labels)
    loss = jax.block_until_ready(loss)

    ref = _reference(cls_input, labels)
    assert jnp.allclose(loss, ref, atol=1e-5, rtol=1e-5), (loss, ref)

    print("KERNEL_OK")
</pallas_src>

<mosaic_0001>
module attributes {stable_mosaic.version = 11 : i64} {
  func.func @_rpn_cls_loss_kernel(%arg0: i32, %arg1: memref<2x8x128xf32, #tpu.memory_space<vmem>>, %arg2: memref<8x128xf32, #tpu.memory_space<vmem>>, %arg3: memref<1x1xf32, #tpu.memory_space<smem>>, %arg4: memref<2xf32, #tpu.memory_space<smem>>) attributes {dimension_semantics = [#tpu.dimension_semantics<arbitrary>], iteration_bounds = array<i64: 1>, scalar_prefetch = 0 : i64, scratch_operands = 1 : i64, tpu.core_type = #tpu.core_type<tc>, window_params = [{transform_indices = @transform_0, window_bounds = array<i64: 2, 8, 128>}, {transform_indices = @transform_1, window_bounds = array<i64: 8, 128>}, {transform_indices = @transform_2, window_bounds = array<i64: 1, 1>}]} {
    %c0_i32 = arith.constant 0 : i32
    %0 = arith.cmpi eq, %arg0, %c0_i32 : i32
    %1 = arith.extui %0 : i1 to i32
    %c0_i32_0 = arith.constant 0 : i32
    %2 = arith.cmpi ne, %1, %c0_i32_0 : i32
    scf.if %2 {
      %cst_20 = arith.constant 0.000000e+00 : f32
      %c0_21 = arith.constant 0 : index
      %46 = memref.load %arg4[%c0_21] : memref<2xf32, #tpu.memory_space<smem>>
      memref.store %cst_20, %arg4[%c0_21] : memref<2xf32, #tpu.memory_space<smem>>
      %cst_22 = arith.constant 0.000000e+00 : f32
      %c1_23 = arith.constant 1 : index
      %47 = memref.load %arg4[%c1_23] : memref<2xf32, #tpu.memory_space<smem>>
      memref.store %cst_22, %arg4[%c1_23] : memref<2xf32, #tpu.memory_space<smem>>
    } else {
    }
    %c0 = arith.constant 0 : index
    %c0_1 = arith.constant 0 : index
    %c0_2 = arith.constant 0 : index
    %3 = vector.load %arg1[%c0, %c0_1, %c0_2] : memref<2x8x128xf32, #tpu.memory_space<vmem>>, vector<1x8x128xf32>
    %4 = vector.shape_cast %3 : vector<1x8x128xf32> to vector<8x128xf32>
    %c1 = arith.constant 1 : index
    %c0_3 = arith.constant 0 : index
    %c0_4 = arith.constant 0 : index
    %5 = vector.load %arg1[%c1, %c0_3, %c0_4] : memref<2x8x128xf32, #tpu.memory_space<vmem>>, vector<1x8x128xf32>
    %6 = vector.shape_cast %5 : vector<1x8x128xf32> to vector<8x128xf32>
    %c0_5 = arith.constant 0 : index
    %c0_6 = arith.constant 0 : index
    %7 = vector.load %arg2[%c0_5, %c0_6] : memref<8x128xf32, #tpu.memory_space<vmem>>, vector<8x128xf32>
    %cst = arith.constant -1.000000e+00 : f32
    %8 = vector.broadcast %cst : f32 to vector<8x128xf32>
    %9 = arith.cmpf one, %7, %8 : vector<8x128xf32>
    %cst_7 = arith.constant 1.000000e+00 : f32
    %10 = vector.broadcast %cst_7 : f32 to vector<8x128xf32>
    %11 = arith.cmpf oeq, %7, %10 : vector<8x128xf32>
    %12 = arith.subf %4, %6 : vector<8x128xf32>
    %13 = arith.subf %6, %4 : vector<8x128xf32>
    %14 = arith.select %11, %12, %13 : vector<8x128xi1>, vector<8x128xf32>
    %cst_8 = arith.constant 0.000000e+00 : f32
    %15 = vector.broadcast %cst_8 : f32 to vector<8x128xf32>
    %16 = arith.maximumf %14, %15 : vector<8x128xf32>
    %17 = math.absf %14 : vector<8x128xf32>
    %cst_9 = arith.constant 0.000000e+00 : f32
    %18 = vector.broadcast %cst_9 : f32 to vector<8x128xf32>
    %19 = arith.subf %18, %17 : vector<8x128xf32>
    %20 = math.exp %19 : vector<8x128xf32>
    %cst_10 = arith.constant 1.000000e+00 : f32
    %21 = vector.broadcast %cst_10 : f32 to vector<8x128xf32>
    %22 = arith.addf %21, %20 : vector<8x128xf32>
    %23 = math.log %22 : vector<8x128xf32>
    %24 = arith.addf %16, %23 : vector<8x128xf32>
    %cst_11 = arith.constant 0.000000e+00 : f32
    %25 = vector.broadcast %cst_11 : f32 to vector<8x128xf32>
    %26 = arith.select %9, %24, %25 : vector<8x128xi1>, vector<8x128xf32>
    %c0_12 = arith.constant 0 : index
    %27 = memref.load %arg4[%c0_12] : memref<2xf32, #tpu.memory_space<smem>>
    %28 = vector.shape_cast %26 : vector<8x128xf32> to vector<1x8x128xf32>
    %cst_13 = arith.constant dense<0.000000e+00> : vector<1xf32>
    %29 = vector.multi_reduction <add>, %28, %cst_13 [1, 2] : vector<1x8x128xf32> to vector<1xf32>
    %30 = vector.shape_cast %29 : vector<1xf32> to vector<1x1x1xf32>
    %31 = vector.extract %30[0, 0, 0] : f32 from vector<1x1x1xf32>
    %32 = arith.addf %27, %31 : f32
    %c0_14 = arith.constant 0 : index
    %33 = memref.load %arg4[%c0_14] : memref<2xf32, #tpu.memory_space<smem>>
    memref.store %32, %arg4[%c0_14] : memref<2xf32, #tpu.memory_space<smem>>
    %c1_15 = arith.constant 1 : index
    %34 = memref.load %arg4[%c1_15] : memref<2xf32, #tpu.memory_space<smem>>
    %35 = arith.extui %9 : vector<8x128xi1> to vector<8x128xi32>
    %36 = arith.sitofp %35 : vector<8x128xi32> to vector<8x128xf32>
    %37 = vector.shape_cast %36 : vector<8x128xf32> to vector<1x8x128xf32>
    %cst_16 = arith.constant dense<0.000000e+00> : vector<1xf32>
    %38 = vector.multi_reduction <add>, %37, %cst_16 [1, 2] : vector<1x8x128xf32> to vector<1xf32>
    %39 = vector.shape_cast %38 : vector<1xf32> to vector<1x1x1xf32>
    %40 = vector.extract %39[0, 0, 0] : f32 from vector<1x1x1xf32>
    %41 = arith.addf %34, %40 : f32
    %c1_17 = arith.constant 1 : index
    %42 = memref.load %arg4[%c1_17] : memref<2xf32, #tpu.memory_space<smem>>
    memref.store %41, %arg4[%c1_17] : memref<2xf32, #tpu.memory_space<smem>>
    %c0_i32_18 = arith.constant 0 : i32
    %43 = arith.cmpi eq, %arg0, %c0_i32_18 : i32
    %44 = arith.extui %43 : i1 to i32
    %c0_i32_19 = arith.constant 0 : i32
    %45 = arith.cmpi ne, %44, %c0_i32_19 : i32
    scf.if %45 {
      %c0_20 = arith.constant 0 : index
      %46 = memref.load %arg4[%c0_20] : memref<2xf32, #tpu.memory_space<smem>>
      %c1_21 = arith.constant 1 : index
      %47 = memref.load %arg4[%c1_21] : memref<2xf32, #tpu.memory_space<smem>>
      %cst_22 = arith.constant 0.000000e+00 : f32
      %48 = arith.cmpf ogt, %47, %cst_22 : f32
      %cst_23 = arith.constant 1.000000e+00 : f32
      %49 = arith.maximumf %47, %cst_23 : f32
      %50 = arith.divf %46, %49 : f32
      %cst_24 = arith.constant 0.000000e+00 : f32
      %51 = arith.select %48, %50, %cst_24 : f32
      %cst_25 = arith.constant 0.000000e+00 : f32
      %cst_26 = arith.constant 1.000000e+01 : f32
      %52 = arith.maximumf %cst_25, %51 : f32
      %53 = arith.minimumf %cst_26, %52 : f32
      %c0_27 = arith.constant 0 : index
      %c0_28 = arith.constant 0 : index
      %54 = memref.load %arg3[%c0_27, %c0_28] : memref<1x1xf32, #tpu.memory_space<smem>>
      memref.store %53, %arg3[%c0_27, %c0_28] : memref<1x1xf32, #tpu.memory_space<smem>>
    } else {
    }
    return
  }
  func.func @transform_0(%arg0: i32) -> (i32, i32, i32) {
    %c0_i32 = arith.constant 0 : i32
    %c0_i32_0 = arith.constant 0 : i32
    %c0_i32_1 = arith.constant 0 : i32
    return %c0_i32, %arg0, %c0_i32_0 : i32, i32, i32
  }
  func.func @transform_1(%arg0: i32) -> (i32, i32) {
    %c0_i32 = arith.constant 0 : i32
    %c0_i32_0 = arith.constant 0 : i32
    return %arg0, %c0_i32 : i32, i32
  }
  func.func @transform_2(%arg0: i32) -> (i32, i32) {
    %c0_i32 = arith.constant 0 : i32
    %c0_i32_0 = arith.constant 0 : i32
    %c0_i32_1 = arith.constant 0 : i32
    return %c0_i32, %c0_i32_0 : i32, i32
  }
}

</mosaic_0001>

<llo_original>
// kernel: tpu_custom_call.1
$region0: #{tpu_custom_call.1}
  #allocation0 [shape = 'u32[]', space=smem, size = 0x4, offset = 0x4, fixed_abs, tag = 'smem constant byte address 0x4 - core index']
  #allocation1 [shape = 'u32[144,128]{1,0:T(1,128)}', space=vmem, size = 0x12000, scoped, tag = 'internal scratch']
  #allocation2 [shape = 'f32[2]{0:T(128)}', space=smem, size = 0x200, scoped, tag = 'scratch operand']
  %s0 = inlined_call_operand.hbm [shape: f32[2,8,128], index: 0, kind: input, shape index: {}]
  %s1 = inlined_call_operand.hbm [shape: f32[8,128], index: 1, kind: input, shape index: {}]
  %s2 = inlined_call_operand.hbm [shape: f32[1,1], index: 2, kind: output, shape index: {}]
  %s3 = sld [smem:[#allocation0]]
  $region34: #{tpu_custom_call.1} parent=0
    _
  %s5 = ssub.s32 1, %s3
  %s6 = scalar_select 0, %s5, %s3
  $region1: #{tpu_custom_call.1} parent=0
    #allocation3 [shape = 'u8[8192]{0}', space=vmem, size = 0x2000, scoped, tag = 'input window, operand 0, single buffered']
    #allocation4 [shape = 's32[1]{0}', space=sflag, size = 0x4, scoped, tag = 'scoped memory for tpu_custom_call.1']
    #allocation5 [shape = 's32[1]{0}', space=sflag, size = 0x4, scoped, tag = 'scoped memory for tpu_custom_call.1']
    #allocation6 [shape = 'u8[4096]{0}', space=vmem, size = 0x1000, scoped, tag = 'input window, operand 1, single buffered']
    #allocation7 [shape = 's32[1]{0}', space=sflag, size = 0x4, scoped, tag = 'scoped memory for tpu_custom_call.1']
    #allocation8 [shape = 'u8[512]{0}', space=smem, size = 0x200, scoped, tag = 'output window, operand 0, single buffered']
    %7 = vsyncpa [#allocation4], 0
    %8 = vsyncpa [#allocation7], 0
    %9 = vsyncpa [#allocation5], 0
    // Predicated region
    $region2: #{tpu_custom_call.1} parent=1 // pred_check
      _
    $region3: #{tpu_custom_call.1} parent=1 // pred_check_branch
      %11 = sbr.rel (0) target = $region5
    $region4: #{tpu_custom_call.1} parent=1 // pred_region
      %s13 = ssub.s32 256, 256
      %14 = vsyncadd [#allocation4], %s13
      %s15 = sshll.u32 [#allocation3], 4
      %s16 = int_to_ptr.vmem [resolvable:$true] %s15
      %21 = dma.hbm_to_vmem [thread:$0]  %s0, 256, %s16, [#allocation4], 128, 128, 8
    $region5: #{tpu_custom_call.1} parent=1 // pred_fallthru
      _
    // Predicated region
    $region6: #{tpu_custom_call.1} parent=1 // pred_check
      _
    $region7: #{tpu_custom_call.1} parent=1 // pred_check_branch
      %23 = sbr.rel (0) target = $region9
    $region8: #{tpu_custom_call.1} parent=1 // pred_region
      %s25 = ssub.s32 128, 128
      %26 = vsyncadd [#allocation7], %s25
      %s28 = sshll.u32 [#allocation6], 4
      %s29 = int_to_ptr.vmem [resolvable:$true] %s28
      %31 = dma.hbm_to_vmem [thread:$0]  %s1, 128, %s29, [#allocation7]
    $region9: #{tpu_custom_call.1} parent=1 // pred_fallthru
      _
    // Predicated region
    $region10: #{tpu_custom_call.1} parent=1 // pred_check
      _
    $region11: #{tpu_custom_call.1} parent=1 // pred_check_branch
      %33 = sbr.rel (0) target = $region13
    $region12: #{tpu_custom_call.1} parent=1 // pred_region
      %34 = dma.done [#allocation4], 256
    $region13: #{tpu_custom_call.1} parent=1 // pred_fallthru
      _
    // Predicated region
    $region14: #{tpu_custom_call.1} parent=1 // pred_check
      _
    $region15: #{tpu_custom_call.1} parent=1 // pred_check_branch
      %36 = sbr.rel (0) target = $region17
    $region16: #{tpu_custom_call.1} parent=1 // pred_region
      %37 = dma.done [#allocation7], 128
    $region17: #{tpu_custom_call.1} parent=1 // pred_fallthru
      _
    %p38 = scmp.eq.s32.totalorder 0, 0
    // Predicated region
    $region18: #{tpu_custom_call.1} parent=1 // pred_check
      %p39 = pneg %p38
    $region19: #{tpu_custom_call.1} parent=1 // pred_check_branch
      %41 = sbr.rel (%p39) target = $region21
    $region20: #{tpu_custom_call.1} parent=1 // pred_region
      %s42 = scalar_lea.smem [#allocation2], 0
      %43 = sst [smem:[%s42]] 0.0
      %s44 = scalar_lea.smem [#allocation2], 1
      %45 = sst [smem:[%s44]] 0.0
    $region21: #{tpu_custom_call.1} parent=1 // pred_fallthru
      _
    %v46 = vld [vmem:[#allocation3] sm:$0xff]
    %s47 = scalar_lea.vmem [#allocation3], 8
    %v48 = vld [vmem:[%s47] sm:$0xff]
    %v49 = vld [vmem:[#allocation6] sm:$0xff]
    %vm50 = vcmp.ne.f32.partialorder %v49, -1.0
    %vm51 = vcmp.eq.f32.partialorder %v49, 1.0
    %v52 = vsub.f32 %v46, %v48
    %v53 = vsub.f32 %v48, %v46
    %v54 = vsel %vm51, %v52, %v53
    %v55 = vmax.f32 %v54, 0.0
    %v56 = vand.u32 2147483647, %v54
    %v57 = vsub.f32 0.0, %v56
    %v58 = vmul.f32 %v57, 1.442695
    %v59 = vpow.pop %v58
    %v60 = vadd.f32 %v59, 1.0
    %v61 = vlog2.pop %v60
    %v62 = vmul.f32 %v61, 0.6931472
    %v63 = vadd.f32 %v55, %v62
    %v64 = vsel %vm50, %v63, 0.0
    %s65 = sld [smem:[#allocation2]]
    %66 = vadd.xlane.f32.xlu0 %v64
    %v67 = vpop.xlane.xlu0 %66
    %v68 = vrot.slane %v67, 4
    %v69 = vadd.f32 %v67, %v68
    %v70 = vrot.slane %v69, 2
    %v71 = vadd.f32 %v69, %v70
    %v72 = vrot.slane %v71, 1
    %v73 = vadd.f32 %v71, %v72
    %s74 = vtos %v73
    %s75 = sadd.f32 %s65, %s74
    %s76 = scalar_lea.smem [#allocation2], 0
    %77 = sst [smem:[%s76]] %s75
    %s78 = sld [smem:[#allocation2 + $0x1]]
    %v79 = vsel %vm50, 1, 0
    %v80 = vcvt.s32.f32 %v79
    %81 = vadd.xlane.f32.xlu0 %v80
    %v82 = vpop.xlane.xlu0 %81
    %v83 = vrot.slane %v82, 4
    %v84 = vadd.f32 %v82, %v83
    %v85 = vrot.slane %v84, 2
    %v86 = vadd.f32 %v84, %v85
    %v87 = vrot.slane %v86, 1
    %v88 = vadd.f32 %v86, %v87
    %s89 = vtos %v88
    %s90 = sadd.f32 %s78, %s89
    %s91 = scalar_lea.smem [#allocation2], 1
    %92 = sst [smem:[%s91]] %s90
    // Predicated region
    $region22: #{tpu_custom_call.1} parent=1 // pred_check
      %p93 = pneg %p38
    $region23: #{tpu_custom_call.1} parent=1 // pred_check_branch
      %95 = sbr.rel (%p93) target = $region25
    $region24: #{tpu_custom_call.1} parent=1 // pred_region
      %s96 = sld [smem:[#allocation2]]
      %s97 = sld [smem:[#allocation2 + $0x1]]
      %p98 = scmp.gt.f32.partialorder %s97, 0.0
      %s99 = smax.f32 %s97, 1.0
      %v100 = vstv %s99
      %v101 = vrcp.pop %v100
      %s102 = vtos %v101
      %s103 = smul.f32 %s96, %s102
      %s104 = scalar_select %p98, %s103, 0.0
      %s105 = smax.f32 %s104, 0.0
      %s106 = smin.f32 %s105, 10.0
      %s107 = scalar_lea.smem [#allocation8], 0
      %108 = sst [smem:[%s107]] %s106
    $region25: #{tpu_custom_call.1} parent=1 // pred_fallthru
      _
    // Predicated region
    $region26: #{tpu_custom_call.1} parent=1 // pred_check
      _
    $region27: #{tpu_custom_call.1} parent=1 // pred_check_branch
      %110 = sbr.rel (0) target = $region29
    $region28: #{tpu_custom_call.1} parent=1 // pred_region
      %s112 = ssub.s32 16, 16
      %113 = vsyncadd [#allocation5], %s112
      %116 = dma.smem_to_hbm [#allocation8], 16, %s2, [#allocation5]
    $region29: #{tpu_custom_call.1} parent=1 // pred_fallthru
      _
    // Predicated region
    $region30: #{tpu_custom_call.1} parent=1 // pred_check
      _
    $region31: #{tpu_custom_call.1} parent=1 // pred_check_branch
      %118 = sbr.rel (0) target = $region33
    $region32: #{tpu_custom_call.1} parent=1 // pred_region
      %119 = dma.done [#allocation5], 16
    $region33: #{tpu_custom_call.1} parent=1 // pred_fallthru
      _
    %120 = sfence
    %121 = vsyncpa [#allocation4], 1
    %122 = vsyncpa [#allocation7], 1
    %123 = vsyncpa [#allocation5], 1

</llo_original>
